<compile_context>
chip_gen: v5e
topology: v5e:2x2
jax: 0.10.0
libtpu: 0.0.40
codegen_flags: <defaults>
</compile_context>

<pallas_src>
import functools

import jax
import jax.numpy as jnp
from jax.experimental import pallas as pl
from jax.experimental.pallas import tpu as pltpu

EPS = 1e-5
LANE = 128
SUB = 8
VMEM_LIMIT = 32 * 1024 * 1024      # explicit scoped-VMEM limit (safe on v5e/v6e/v7x)
X_BLOCK_BUDGET = 4 * 1024 * 1024   # target bytes per streamed x block (keeps
                                   # double-buffered in+out well under the limit)


def _round_up(v, m):
    return ((v + m - 1) // m) * m


# --------------------- 2-D path: (R, C), channels on lanes -------------------


def _bn2d_fused_kernel(x_ref, g_ref, b_ref, o_ref, *, n_rows):
    # x_ref: (R, TC); g_ref / b_ref: (1, TC) float32
    x = x_ref[...].astype(jnp.float32)
    s = jnp.sum(x, axis=0, keepdims=True)
    ss = jnp.sum(x * x, axis=0, keepdims=True)
    inv_n = 1.0 / n_rows
    mean = s * inv_n
    var = ss * inv_n - mean * mean
    inv_std = jax.lax.rsqrt(var + EPS)
    scale = g_ref[...] * inv_std
    bias = b_ref[...] - mean * scale
    o_ref[...] = (x * scale + bias).astype(o_ref.dtype)


def _bn2d_stats_kernel(x_ref, sum_ref, ssq_ref, *, n_rows, block_rows, mask_rows):
    r = pl.program_id(1)

    @pl.when(r == 0)
    def _():
        sum_ref[...] = jnp.zeros_like(sum_ref)
        ssq_ref[...] = jnp.zeros_like(ssq_ref)

    x = x_ref[...].astype(jnp.float32)
    if mask_rows:  # static flag: mask the padded rows of the last partial block
        rows = jax.lax.broadcasted_iota(jnp.int32, x.shape, 0) + r * block_rows
        x = jnp.where(rows < n_rows, x, 0.0)
    sum_ref[...] += jnp.sum(x, axis=0, keepdims=True)
    ssq_ref[...] += jnp.sum(x * x, axis=0, keepdims=True)


def _bn2d_apply_kernel(x_ref, scale_ref, bias_ref, o_ref):
    x = x_ref[...].astype(jnp.float32)
    o_ref[...] = (x * scale_ref[...] + bias_ref[...]).astype(o_ref.dtype)


def _bn_2d(x, gamma, beta):
    R, C = x.shape
    Cp = _round_up(C, LANE)
    if Cp != C:
        # Lane-dense padding: padded channels carry zeros (gamma = beta = 0 there),
        # so they normalize to 0 and are sliced off afterwards.
        x = jnp.pad(x, ((0, 0), (0, Cp - C)))
        gamma = jnp.pad(gamma, (0, Cp - C))
        beta = jnp.pad(beta, (0, Cp - C))
    g2 = gamma.reshape(1, Cp).astype(jnp.float32)
    b2 = beta.reshape(1, Cp).astype(jnp.float32)
    itemsize = x.dtype.itemsize

    # Channel tile for the fused single-sweep kernel (whole R rows per block).
    tc_budget = (X_BLOCK_BUDGET // max(R * 4, 1)) // LANE * LANE
    tc_fused = min(Cp, 1024, tc_budget)

    if tc_fused >= LANE:
        # ---- fused: one HBM read + one HBM write of x -----------------------
        tc = tc_fused
        out = pl.pallas_call(
            functools.partial(_bn2d_fused_kernel, n_rows=R),
            out_shape=jax.ShapeDtypeStruct((R, Cp), x.dtype),
            grid=(pl.cdiv(Cp, tc),),
            in_specs=[
                pl.BlockSpec((R, tc), lambda c: (0, c)),
                pl.BlockSpec((1, tc), lambda c: (0, c)),
                pl.BlockSpec((1, tc), lambda c: (0, c)),
            ],
            out_specs=pl.BlockSpec((R, tc), lambda c: (0, c)),
            compiler_params=pltpu.CompilerParams(
                dimension_semantics=("parallel",),
                vmem_limit_bytes=VMEM_LIMIT,
            ),
            cost_estimate=pl.CostEstimate(
                flops=5 * R * Cp,
                transcendentals=Cp,
                bytes_accessed=2 * R * Cp * itemsize,
            ),
        )(x, g2, b2)
    else:
        # ---- two-pass: stats accumulation over row tiles, then apply --------
        tc = min(Cp, 512)
        tr = max(SUB, (X_BLOCK_BUDGET // (tc * 4)) // SUB * SUB)
        tr = min(tr, _round_up(R, SUB))
        n_c = pl.cdiv(Cp, tc)
        n_r = pl.cdiv(R, tr)
        mask_rows = (R % tr) != 0

        sums, ssqs = pl.pallas_call(
            functools.partial(
                _bn2d_stats_kernel, n_rows=R, block_rows=tr, mask_rows=mask_rows
            ),
            out_shape=(
                jax.ShapeDtypeStruct((1, Cp), jnp.float32),
                jax.ShapeDtypeStruct((1, Cp), jnp.float32),
            ),
            grid=(n_c, n_r),
            in_specs=[pl.BlockSpec((tr, tc), lambda c, r: (r, c))],
            out_specs=(
                pl.BlockSpec((1, tc), lambda c, r: (0, c)),
                pl.BlockSpec((1, tc), lambda c, r: (0, c)),
            ),
            compiler_params=pltpu.CompilerParams(
                dimension_semantics=("parallel", "arbitrary"),
                vmem_limit_bytes=VMEM_LIMIT,
            ),
            cost_estimate=pl.CostEstimate(
                flops=3 * R * Cp,
                transcendentals=0,
                bytes_accessed=R * Cp * itemsize,
            ),
        )(x)

        mean = sums / R
        var = ssqs / R - mean * mean
        inv_std = jax.lax.rsqrt(var + EPS)
        scale = g2 * inv_std          # (1, Cp) f32
        bias = b2 - mean * scale      # (1, Cp) f32

        out = pl.pallas_call(
            _bn2d_apply_kernel,
            out_shape=jax.ShapeDtypeStruct((R, Cp), x.dtype),
            grid=(n_c, n_r),
            in_specs=[
                pl.BlockSpec((tr, tc), lambda c, r: (r, c)),
                pl.BlockSpec((1, tc), lambda c, r: (0, c)),
                pl.BlockSpec((1, tc), lambda c, r: (0, c)),
            ],
            out_specs=pl.BlockSpec((tr, tc), lambda c, r: (r, c)),
            compiler_params=pltpu.CompilerParams(
                dimension_semantics=("parallel", "parallel"),
                vmem_limit_bytes=VMEM_LIMIT,
            ),
            cost_estimate=pl.CostEstimate(
                flops=2 * R * Cp,
                transcendentals=0,
                bytes_accessed=2 * R * Cp * itemsize,
            ),
        )(x, scale, bias)

    if Cp != C:
        out = out[:, :C]
    return out


# ----------- 3-D path: (N, C, L) consumed directly, no XLA transposes --------


def _bn3d_stats_kernel(x_ref, sum_ref, ssq_ref):
    n = pl.program_id(1)

    @pl.when(n == 0)
    def _():
        sum_ref[...] = jnp.zeros_like(sum_ref)
        ssq_ref[...] = jnp.zeros_like(ssq_ref)

    x = x_ref[...].astype(jnp.float32)                     # (1, TC, L)
    sum_ref[...] += jnp.sum(x, axis=-1, keepdims=True)     # (1, TC, 1)
    ssq_ref[...] += jnp.sum(x * x, axis=-1, keepdims=True)


def _bn3d_apply_kernel(x_ref, scale_ref, bias_ref, o_ref):
    x = x_ref[...].astype(jnp.float32)                     # (1, TC, L)
    o_ref[...] = (x * scale_ref[...] + bias_ref[...]).astype(o_ref.dtype)


def _bn_3d(x, gamma, beta):
    N, C, L = x.shape
    count = N * L
    itemsize = x.dtype.itemsize

    # Channel tile lives on the sublane axis (multiple of 8 or full C); L stays
    # whole on the lane axis, so (N, C, L) is consumed without any transposes.
    # TODO(synk): tile L as an extra reduction axis for extremely large L.
    tc_cap = max(SUB, (X_BLOCK_BUDGET // max(L * 4, 1)) // SUB * SUB)
    tc = C if C <= tc_cap else min(tc_cap, 1024)
    n_c = pl.cdiv(C, tc)

    sums, ssqs = pl.pallas_call(
        _bn3d_stats_kernel,
        out_shape=(
            jax.ShapeDtypeStruct((1, C, 1), jnp.float32),
            jax.ShapeDtypeStruct((1, C, 1), jnp.float32),
        ),
        grid=(n_c, N),
        in_specs=[pl.BlockSpec((1, tc, L), lambda c, n: (n, c, 0))],
        out_specs=(
            pl.BlockSpec((1, tc, 1), lambda c, n: (0, c, 0)),
            pl.BlockSpec((1, tc, 1), lambda c, n: (0, c, 0)),
        ),
        compiler_params=pltpu.CompilerParams(
            dimension_semantics=("parallel", "arbitrary"),
            vmem_limit_bytes=VMEM_LIMIT,
        ),
        cost_estimate=pl.CostEstimate(
            flops=3 * N * C * L,
            transcendentals=0,
            bytes_accessed=N * C * L * itemsize,
        ),
    )(x)

    mean = sums / count                     # (1, C, 1) f32
    var = ssqs / count - mean * mean
    inv_std = jax.lax.rsqrt(var + EPS)
    scale = gamma.reshape(1, C, 1).astype(jnp.float32) * inv_std
    bias = beta.reshape(1, C, 1).astype(jnp.float32) - mean * scale

    out = pl.pallas_call(
        _bn3d_apply_kernel,
        out_shape=jax.ShapeDtypeStruct((N, C, L), x.dtype),
        grid=(n_c, N),
        in_specs=[
            pl.BlockSpec((1, tc, L), lambda c, n: (n, c, 0)),
            pl.BlockSpec((1, tc, 1), lambda c, n: (0, c, 0)),
            pl.BlockSpec((1, tc, 1), lambda c, n: (0, c, 0)),
        ],
        out_specs=pl.BlockSpec((1, tc, L), lambda c, n: (n, c, 0)),
        compiler_params=pltpu.CompilerParams(
            dimension_semantics=("parallel", "parallel"),
            vmem_limit_bytes=VMEM_LIMIT,
        ),
        cost_estimate=pl.CostEstimate(
            flops=2 * N * C * L,
            transcendentals=C,
            bytes_accessed=2 * N * C * L * itemsize,
        ),
    )(x, scale, bias)
    return out


def batchnorm1d(x, gamma, beta):
    """Training-mode BatchNorm1d forward (batch statistics, biased variance).

    x: (N, C) or (N, C, L) (PyTorch convention); gamma, beta: (C,)
    """
    if x.ndim == 2:
        return _bn_2d(x, gamma, beta)
    if x.ndim == 3:
        return _bn_3d(x, gamma, beta)
    raise ValueError("BatchNorm1d expects 2D or 3D input")


if __name__ == "__main__":
    key = jax.random.PRNGKey(0)
    k2d, k3d, kg, kb = jax.random.split(key, 4)

    C = 32
    # Deterministic, non-trivial affine parameters (exercise the scale/bias fold).
    gamma = 1.0 + 0.1 * jax.random.normal(kg, (C,), dtype=jnp.float32)
    beta = 0.1 * jax.random.normal(kb, (C,), dtype=jnp.float32)

    # ---- 3-D input (N, C, L): transpose-free path ---------------------------
    N, L = 4, 8
    x3 = jax.random.normal(k3d, (N, C, L), dtype=jnp.float32)
    out3 = jax.block_until_ready(batchnorm1d(x3, gamma, beta))
    mean3 = jnp.mean(x3, axis=(0, 2), keepdims=True)
    var3 = jnp.mean((x3 - mean3) ** 2, axis=(0, 2), keepdims=True)
    ref3 = (x3 - mean3) * jax.lax.rsqrt(var3 + EPS) * gamma[None, :, None] \
        + beta[None, :, None]
    assert out3.shape == x3.shape
    assert jnp.max(jnp.abs(out3 - ref3)) < 1e-4

    # ---- 2-D input (N, C): lane-dense channel-padded path -------------------
    N2 = 16
    x2 = jax.random.normal(k2d, (N2, C), dtype=jnp.float32)
    out2 = jax.block_until_ready(batchnorm1d(x2, gamma, beta))
    mean2 = jnp.mean(x2, axis=0, keepdims=True)
    var2 = jnp.mean((x2 - mean2) ** 2, axis=0, keepdims=True)
    ref2 = (x2 - mean2) * jax.lax.rsqrt(var2 + EPS) * gamma[None, :] + beta[None, :]
    assert out2.shape == x2.shape
    assert jnp.max(jnp.abs(out2 - ref2)) < 1e-4

    # TODO(synk): running_mean/running_var buffer updates (momentum, unbiased
    # variance) are training-state side effects and are not modeled; only the
    # normalized forward output is produced.
    print("KERNEL_OK")
</pallas_src>

<mosaic_0001>
module attributes {stable_mosaic.version = 11 : i64} {
  func.func @_bn3d_stats_kernel(%arg0: i32, %arg1: i32, %arg2: memref<1x32x8xf32, #tpu.memory_space<vmem>>, %arg3: memref<1x32x1xf32, #tpu.memory_space<vmem>>, %arg4: memref<1x32x1xf32, #tpu.memory_space<vmem>>) attributes {dimension_semantics = [#tpu.dimension_semantics<parallel>, #tpu.dimension_semantics<arbitrary>], iteration_bounds = array<i64: 1, 4>, scalar_prefetch = 0 : i64, scratch_operands = 0 : i64, tpu.core_type = #tpu.core_type<tc>, window_params = [{transform_indices = @transform_0, window_bounds = array<i64: 1, 32, 8>}, {transform_indices = @transform_1, window_bounds = array<i64: 1, 32, 1>}, {transform_indices = @transform_2, window_bounds = array<i64: 1, 32, 1>}]} {
    %c0_i32 = arith.constant 0 : i32
    %0 = arith.cmpi eq, %arg1, %c0_i32 : i32
    %1 = arith.extui %0 : i1 to i32
    %c0_i32_0 = arith.constant 0 : i32
    %2 = arith.cmpi ne, %1, %c0_i32_0 : i32
    scf.if %2 {
      %cst_16 = arith.constant 0.000000e+00 : f32
      %15 = vector.broadcast %cst_16 : f32 to vector<1x32x1xf32>
      %c0_17 = arith.constant 0 : index
      %c0_18 = arith.constant 0 : index
      %c0_19 = arith.constant 0 : index
      %16 = vector.load %arg3[%c0_17, %c0_18, %c0_19] : memref<1x32x1xf32, #tpu.memory_space<vmem>>, vector<1x32x1xf32>
      tpu.vector_store %arg3[%c0_17, %c0_18, %c0_19], %15 {strides = array<i32>} : memref<1x32x1xf32, #tpu.memory_space<vmem>>, vector<1x32x1xf32>,
      %cst_20 = arith.constant 0.000000e+00 : f32
      %17 = vector.broadcast %cst_20 : f32 to vector<1x32x1xf32>
      %c0_21 = arith.constant 0 : index
      %c0_22 = arith.constant 0 : index
      %c0_23 = arith.constant 0 : index
      %18 = vector.load %arg4[%c0_21, %c0_22, %c0_23] : memref<1x32x1xf32, #tpu.memory_space<vmem>>, vector<1x32x1xf32>
      tpu.vector_store %arg4[%c0_21, %c0_22, %c0_23], %17 {strides = array<i32>} : memref<1x32x1xf32, #tpu.memory_space<vmem>>, vector<1x32x1xf32>,
    } else {
    }
    %c0 = arith.constant 0 : index
    %c0_1 = arith.constant 0 : index
    %c0_2 = arith.constant 0 : index
    %3 = vector.load %arg2[%c0, %c0_1, %c0_2] : memref<1x32x8xf32, #tpu.memory_space<vmem>>, vector<1x32x8xf32>
    %c0_3 = arith.constant 0 : index
    %c0_4 = arith.constant 0 : index
    %c0_5 = arith.constant 0 : index
    %4 = vector.load %arg3[%c0_3, %c0_4, %c0_5] : memref<1x32x1xf32, #tpu.memory_space<vmem>>, vector<1x32x1xf32>
    %cst = arith.constant dense<0.000000e+00> : vector<1x32xf32>
    %5 = vector.multi_reduction <add>, %3, %cst [2] : vector<1x32x8xf32> to vector<1x32xf32>
    %6 = vector.shape_cast %5 : vector<1x32xf32> to vector<1x32x1xf32>
    %7 = arith.addf %4, %6 : vector<1x32x1xf32>
    %c0_6 = arith.constant 0 : index
    %c0_7 = arith.constant 0 : index
    %c0_8 = arith.constant 0 : index
    %8 = vector.load %arg3[%c0_6, %c0_7, %c0_8] : memref<1x32x1xf32, #tpu.memory_space<vmem>>, vector<1x32x1xf32>
    tpu.vector_store %arg3[%c0_6, %c0_7, %c0_8], %7 {strides = array<i32>} : memref<1x32x1xf32, #tpu.memory_space<vmem>>, vector<1x32x1xf32>,
    %c0_9 = arith.constant 0 : index
    %c0_10 = arith.constant 0 : index
    %c0_11 = arith.constant 0 : index
    %9 = vector.load %arg4[%c0_9, %c0_10, %c0_11] : memref<1x32x1xf32, #tpu.memory_space<vmem>>, vector<1x32x1xf32>
    %10 = arith.mulf %3, %3 : vector<1x32x8xf32>
    %cst_12 = arith.constant dense<0.000000e+00> : vector<1x32xf32>
    %11 = vector.multi_reduction <add>, %10, %cst_12 [2] : vector<1x32x8xf32> to vector<1x32xf32>
    %12 = vector.shape_cast %11 : vector<1x32xf32> to vector<1x32x1xf32>
    %13 = arith.addf %9, %12 : vector<1x32x1xf32>
    %c0_13 = arith.constant 0 : index
    %c0_14 = arith.constant 0 : index
    %c0_15 = arith.constant 0 : index
    %14 = vector.load %arg4[%c0_13, %c0_14, %c0_15] : memref<1x32x1xf32, #tpu.memory_space<vmem>>, vector<1x32x1xf32>
    tpu.vector_store %arg4[%c0_13, %c0_14, %c0_15], %13 {strides = array<i32>} : memref<1x32x1xf32, #tpu.memory_space<vmem>>, vector<1x32x1xf32>,
    return
  }
  func.func @transform_0(%arg0: i32, %arg1: i32) -> (i32, i32, i32) {
    %c0_i32 = arith.constant 0 : i32
    %c0_i32_0 = arith.constant 0 : i32
    return %arg1, %arg0, %c0_i32 : i32, i32, i32
  }
  func.func @transform_1(%arg0: i32, %arg1: i32) -> (i32, i32, i32) {
    %c0_i32 = arith.constant 0 : i32
    %c0_i32_0 = arith.constant 0 : i32
    %c0_i32_1 = arith.constant 0 : i32
    return %c0_i32, %arg0, %c0_i32_0 : i32, i32, i32
  }
  func.func @transform_2(%arg0: i32, %arg1: i32) -> (i32, i32, i32) {
    %c0_i32 = arith.constant 0 : i32
    %c0_i32_0 = arith.constant 0 : i32
    %c0_i32_1 = arith.constant 0 : i32
    return %c0_i32, %arg0, %c0_i32_0 : i32, i32, i32
  }
}

</mosaic_0001>

<llo_original>
// kernel: tpu_custom_call.1
$region0: #{tpu_custom_call.1}
  #allocation0 [shape = 'u32[]', space=smem, size = 0x4, offset = 0x4, fixed_abs, tag = 'smem constant byte address 0x4 - core index']
  #allocation1 [shape = 'u32[72,128]{1,0:T(1,128)}', space=vmem, size = 0x9000, scoped, tag = 'internal scratch']
  %s0 = inlined_call_operand.vmem [shape: f32[4,32,8], index: 0, kind: input, shape index: {}]
  %s1 = inlined_call_operand.vmem [shape: f32[1,32,1], index: 1, kind: output, shape index: {0}]
  %s2 = inlined_call_operand.vmem [shape: f32[1,32,1], index: 2, kind: output, shape index: {1}]
  %3 = xla_tuple %s1, %s2
  %s4 = sld [smem:[#allocation0]]
  $region49: #{tpu_custom_call.1} parent=0
    _
  %s6 = ssub.s32 1, %s4
  %s7 = scalar_select 0, %s6, %s4
  loop: start=0, step=1, limit=6
  $region2: #{tpu_custom_call.1} parent=0 // loop_pre_header
    _
  $region3: #{tpu_custom_call.1} parent=0 // loop_header
    %s9 = sphi 0, %s13
    %p10 = scmp.ge.s32.totalorder %s9, 6
    %s16 = sphi 0, %s28
    %s17 = sphi 0, %s24
    %s18 = sphi 0, %s16
    %s19 = sphi 0, %s17
    %s20 = sphi 0, %s18
    %s21 = sphi 0, %s19
    %s33 = sphi 0, %s35
    %s36 = sphi 0, %s33
    %s37 = sphi 0, %s36
    %s53 = sphi 0, %s37
    %s59 = sphi 0, %s61
    %s62 = sphi 0, %s59
    %s63 = sphi 0, %s62
    %s79 = sphi 0, %s63
    %s85 = sphi 0, %s87
    %s88 = sphi 0, %s85
    %s89 = sphi 0, %s88
    %s105 = sphi 0, %s89
  $region4: #{tpu_custom_call.1} parent=0 // loop_header_branch
    %12 = sbr.rel (%p10) target = $region8
  $region5: #{tpu_custom_call.1} parent=0 // loop_body
    %s14 = ssub.s32 %s9, 1
    %s15 = ssub.s32 %s9, 2
    %s22 = sadd.s32 1, %s17
    %p23 = scmp.ge.s32.totalorder %s22, 4
    %s24 = scalar_select %p23, 0, %s22
    %s25 = sadd.s32 1, %s16
    %s26 = scalar_select %p23, %s25, %s16
    %p27 = scmp.ge.s32.totalorder %s26, 1
    %s28 = scalar_select %p27, 0, %s26
    %s29 = ssub.s32 %s17, %s24
    %s30 = ssub.s32 %s16, %s28
    %s31 = sor.u32 %s29, %s30
    %p32 = scmp.eq.s32.totalorder %s31, 0
    %s34 = sadd.s32 %s33, 1
    %s35 = scalar_select %p32, %s33, %s34
    %p38 = pneg %p32
    %p39 = scmp.eq.s32.totalorder %s9, 3
    %p40 = por %p38, %p39
    %p41 = scmp.ne.s32.totalorder %s33, %s36
    %p42 = scmp.eq.s32.totalorder %s9, 0
    %p43 = por %p41, %p42
    %p44 = scmp.ne.s32.totalorder %s33, %s36
    %p45 = scmp.eq.s32.totalorder %s14, 3
    %p46 = por %p44, %p45
    %p47 = scmp.ne.s32.totalorder %s36, %s37
    %p48 = scmp.eq.s32.totalorder %s14, 0
    %p49 = por %p47, %p48
    %p50 = scmp.ne.s32.totalorder %s36, %s37
    %p51 = scmp.eq.s32.totalorder %s15, 3
    %p52 = por %p50, %p51
    %p54 = scmp.ne.s32.totalorder %s37, %s53
    %p55 = scmp.eq.s32.totalorder %s15, 0
    %p56 = por %p54, %p55
    %s57 = ssub.s32 %s16, %s28
    %p58 = scmp.eq.s32.totalorder %s57, 0
    %s60 = sadd.s32 %s59, 1
    %s61 = scalar_select %p58, %s59, %s60
    %p64 = pneg %p58
    %p65 = scmp.eq.s32.totalorder %s9, 3
    %p66 = por %p64, %p65
    %p67 = scmp.ne.s32.totalorder %s59, %s62
    %p68 = scmp.eq.s32.totalorder %s9, 0
    %p69 = por %p67, %p68
    %p70 = scmp.ne.s32.totalorder %s59, %s62
    %p71 = scmp.eq.s32.totalorder %s14, 3
    %p72 = por %p70, %p71
    %p73 = scmp.ne.s32.totalorder %s62, %s63
    %p74 = scmp.eq.s32.totalorder %s14, 0
    %p75 = por %p73, %p74
    %p76 = scmp.ne.s32.totalorder %s62, %s63
    %p77 = scmp.eq.s32.totalorder %s15, 3
    %p78 = por %p76, %p77
    %p80 = scmp.ne.s32.totalorder %s63, %s79
    %p81 = scmp.eq.s32.totalorder %s15, 0
    %p82 = por %p80, %p81
    %s83 = ssub.s32 %s16, %s28
    %p84 = scmp.eq.s32.totalorder %s83, 0
    %s86 = sadd.s32 %s85, 1
    %s87 = scalar_select %p84, %s85, %s86
    %p90 = pneg %p84
    %p91 = scmp.eq.s32.totalorder %s9, 3
    %p92 = por %p90, %p91
    %p93 = scmp.ne.s32.totalorder %s85, %s88
    %p94 = scmp.eq.s32.totalorder %s9, 0
    %p95 = por %p93, %p94
    %p96 = scmp.ne.s32.totalorder %s85, %s88
    %p97 = scmp.eq.s32.totalorder %s14, 3
    %p98 = por %p96, %p97
    %p99 = scmp.ne.s32.totalorder %s88, %s89
    %p100 = scmp.eq.s32.totalorder %s14, 0
    %p101 = por %p99, %p100
    %p102 = scmp.ne.s32.totalorder %s88, %s89
    %p103 = scmp.eq.s32.totalorder %s15, 3
    %p104 = por %p102, %p103
    %p106 = scmp.ne.s32.totalorder %s89, %s105
    %p107 = scmp.eq.s32.totalorder %s15, 0
    %p108 = por %p106, %p107
    %p109 = scmp.le.s32.totalorder 1, %s9
    %p110 = scmp.lt.s32.totalorder %s9, 5
    %p111 = pnand %p109, %p110
    %p112 = pneg %p111
    // Predicated region
    $region9: #{tpu_custom_call.1} parent=5 // pred_check
      _
    $region10: #{tpu_custom_call.1} parent=5 // pred_check_branch
      %114 = sbr.rel (%p111) target = $region12
    $region11: #{tpu_custom_call.1} parent=5 // pred_region
      %s115 = ssub.s32 %s9, 1
    $region12: #{tpu_custom_call.1} parent=5 // pred_fallthru
      _
    %p116 = scmp.lt.s32.totalorder %s9, 4
    // Predicated region
    $region13: #{tpu_custom_call.1} parent=5 // pred_check
      %p117 = pneg %p116
    $region14: #{tpu_custom_call.1} parent=5 // pred_check_branch
      %119 = sbr.rel (%p117) target = $region16
    $region15: #{tpu_custom_call.1} parent=5 // pred_region
      // Predicated region
      $region17: #{tpu_custom_call.1} parent=15 // pred_check
        %p120 = pneg %p43
      $region18: #{tpu_custom_call.1} parent=15 // pred_check_branch
        %122 = sbr.rel (%p120) target = $region20
      $region19: #{tpu_custom_call.1} parent=15 // pred_region
        %s123 = smul.u32 4, %s16
        %p124 = scmp.lt.s32.totalorder %s17, 3
        %s125 = scalar_select %p124, %s17, 3
        %p126 = scmp.lt.s32.totalorder %s123, 3
        %s127 = scalar_select %p126, %s123, 3
        %s128 = smul.addr %s125, 4
        %s129 = sadd.s32 %s127, %s128
        %s130 = smul.addr %s129, 8
        %s131 = scalar_lea.vmem %s0, %s130
        %s132 = smul.u32 4, %s16
      $region20: #{tpu_custom_call.1} parent=15 // pred_fallthru
        _
    $region16: #{tpu_custom_call.1} parent=5 // pred_fallthru
      _
    %p133 = scmp.le.s32.totalorder 1, %s9
    %p134 = scmp.lt.s32.totalorder %s9, 5
    %p135 = pnand %p133, %p134
    %p136 = pneg %p135
    // Predicated region
    $region21: #{tpu_custom_call.1} parent=5 // pred_check
      _
    $region22: #{tpu_custom_call.1} parent=5 // pred_check_branch
      %138 = sbr.rel (%p135) target = $region24
    $region23: #{tpu_custom_call.1} parent=5 // pred_region
      %s139 = ssub.s32 %s9, 1
      %s140 = smul.u32 4, %s18
      %p141 = scmp.lt.s32.totalorder %s19, 3
      %s142 = scalar_select %p141, %s19, 3
      %p143 = scmp.lt.s32.totalorder %s140, 3
      %s144 = scalar_select %p143, %s140, 3
      %s145 = smul.addr %s142, 4
      %s146 = sadd.s32 %s144, %s145
      %s147 = smul.addr %s146, 8
      %s148 = scalar_lea.vmem %s0, %s147
      %p149 = pneg %p49
      %p150 = pneg %p46
      %p151 = pneg %p75
      %p152 = pneg %p72
      %s153 = smul.u32 4, %s18
      %p154 = scmp.lt.s32.totalorder %s153, 3
      %s155 = scalar_select %p154, %s153, 3
      %s156 = smul.addr %s155, 8
      %s157 = scalar_lea.vmem %s1, %s156
      %p158 = pneg %p101
      %p159 = pneg %p98
      %s160 = smul.u32 4, %s18
      %p161 = scmp.lt.s32.totalorder %s160, 3
      %s162 = scalar_select %p161, %s160, 3
      %s163 = smul.addr %s162, 8
      %s164 = scalar_lea.vmem %s2, %s163
      %s165 = smul.u32 4, %s18
      %p166 = scmp.lt.s32.totalorder %s19, 3
      %s167 = scalar_select %p166, %s19, 3
      %p168 = scmp.lt.s32.totalorder %s165, 3
      %s169 = scalar_select %p168, %s165, 3
      %s170 = smul.addr %s167, 4
      %s171 = sadd.s32 %s169, %s170
      %s172 = smul.addr %s171, 8
      %s173 = scalar_lea.vmem %s0, %s172
      %s174 = smul.u32 4, %s18
      %s175 = smul.u32 4, %s18
      %p176 = scmp.lt.s32.totalorder %s175, 3
      %s177 = scalar_select %p176, %s175, 3
      %s178 = smul.addr %s177, 8
      %s179 = scalar_lea.vmem %s1, %s178
      %s180 = smul.u32 4, %s18
      %s181 = smul.u32 4, %s18
      %p182 = scmp.lt.s32.totalorder %s181, 3
      %s183 = scalar_select %p182, %s181, 3
      %s184 = smul.addr %s183, 8
      %s185 = scalar_lea.vmem %s2, %s184
      %s186 = smul.u32 4, %s18
      %p187 = scmp.eq.s32.totalorder %s19, 0
      // Predicated region
      $region25: #{tpu_custom_call.1} parent=23 // pred_check
        %p188 = pneg %p187
      $region26: #{tpu_custom_call.1} parent=23 // pred_check_branch
        %190 = sbr.rel (%p188) target = $region28
      $region27: #{tpu_custom_call.1} parent=23 // pred_region
        %vm191 = vcmask 7168
        %192 = vst.msk [vmem:[%s179] sm:$0xff] %vm191, 0.0
        %193 = vst.msk [vmem:[%s179 + $0x8] sm:$0xff] %vm191, 0.0
        %194 = vst.msk [vmem:[%s179 + $0x10] sm:$0xff] %vm191, 0.0
        %195 = vst.msk [vmem:[%s179 + $0x18] sm:$0xff] %vm191, 0.0
        %196 = vst.msk [vmem:[%s185] sm:$0xff] %vm191, 0.0
        %197 = vst.msk [vmem:[%s185 + $0x8] sm:$0xff] %vm191, 0.0
        %198 = vst.msk [vmem:[%s185 + $0x10] sm:$0xff] %vm191, 0.0
        %199 = vst.msk [vmem:[%s185 + $0x18] sm:$0xff] %vm191, 0.0
      $region28: #{tpu_custom_call.1} parent=23 // pred_fallthru
        _
      %v200 = vld [vmem:[%s173] sm:$0xff]
      %v201 = vld [vmem:[%s173 + $0x8] sm:$0xff]
      %v202 = vld [vmem:[%s173 + $0x10] sm:$0xff]
      %v203 = vld [vmem:[%s173 + $0x18] sm:$0xff]
      %v204 = vld [vmem:[%s179] sm:$0xff]
      %v205 = vld [vmem:[%s179 + $0x8] sm:$0xff]
      %v206 = vld [vmem:[%s179 + $0x10] sm:$0xff]
      %v207 = vld [vmem:[%s179 + $0x18] sm:$0xff]
      %vm208 = vcmask 64512
      %v209 = vsel %vm208, %v200, 0.0
      %210 = vadd.xlane.f32.xlu0 %v209
      %v211 = vpop.xlane.xlu0 %210
      %v212 = vsel %vm208, %v201, 0.0
      %213 = vadd.xlane.f32.xlu0 %v212
      %v214 = vpop.xlane.xlu0 %213
      %v215 = vsel %vm208, %v202, 0.0
      %216 = vadd.xlane.f32.xlu0 %v215
      %v217 = vpop.xlane.xlu0 %216
      %v218 = vsel %vm208, %v203, 0.0
      %219 = vadd.xlane.f32.xlu0 %v218
      %v220 = vpop.xlane.xlu0 %219
      %v221 = vadd.f32 %v204, %v211
      %v222 = vadd.f32 %v205, %v214
      %v223 = vadd.f32 %v206, %v217
      %v224 = vadd.f32 %v207, %v220
      %vm225 = vcmask 7168
      %226 = vst.msk [vmem:[%s179] sm:$0xff] %vm225, %v221
      %227 = vst.msk [vmem:[%s179 + $0x8] sm:$0xff] %vm225, %v222
      %228 = vst.msk [vmem:[%s179 + $0x10] sm:$0xff] %vm225, %v223
      %229 = vst.msk [vmem:[%s179 + $0x18] sm:$0xff] %vm225, %v224
      %v230 = vld [vmem:[%s185] sm:$0xff]
      %v231 = vld [vmem:[%s185 + $0x8] sm:$0xff]
      %v232 = vld [vmem:[%s185 + $0x10] sm:$0xff]
      %v233 = vld [vmem:[%s185 + $0x18] sm:$0xff]
      %v234 = vmul.f32 %v200, %v200
      %v235 = vmul.f32 %v201, %v201
      %v236 = vmul.f32 %v202, %v202
      %v237 = vmul.f32 %v203, %v203
      %v238 = vsel %vm208, %v234, 0.0
      %239 = vadd.xlane.f32.xlu0 %v238
      %v240 = vpop.xlane.xlu0 %239
      %v241 = vsel %vm208, %v235, 0.0
      %242 = vadd.xlane.f32.xlu0 %v241
      %v243 = vpop.xlane.xlu0 %242
      %v244 = vsel %vm208, %v236, 0.0
      %245 = vadd.xlane.f32.xlu0 %v244
      %v246 = vpop.xlane.xlu0 %245
      %v247 = vsel %vm208, %v237, 0.0
      %248 = vadd.xlane.f32.xlu0 %v247
      %v249 = vpop.xlane.xlu0 %248
      %v250 = vadd.f32 %v230, %v240
      %v251 = vadd.f32 %v231, %v243
      %v252 = vadd.f32 %v232, %v246
      %v253 = vadd.f32 %v233, %v249
      %254 = vst.msk [vmem:[%s185] sm:$0xff] %vm225, %v250
      %255 = vst.msk [vmem:[%s185 + $0x8] sm:$0xff] %vm225, %v251
      %256 = vst.msk [vmem:[%s185 + $0x10] sm:$0xff] %vm225, %v252
      %257 = vst.msk [vmem:[%s185 + $0x18] sm:$0xff] %vm225, %v253
      %s258 = smul.u32 4, %s18
      %p259 = scmp.lt.s32.totalorder %s258, 3
      %s260 = scalar_select %p259, %s258, 3
      %s261 = smul.addr %s260, 8
      %s262 = scalar_lea.vmem %s1, %s261
      %s263 = smul.u32 4, %s18
      %p264 = scmp.lt.s32.totalorder %s263, 3
      %s265 = scalar_select %p264, %s263, 3
      %s266 = smul.addr %s265, 8
      %s267 = scalar_lea.vmem %s2, %s266
      // Predicated region
      $region29: #{tpu_custom_call.1} parent=23 // pred_check
        %p268 = pneg %p72
      $region30: #{tpu_custom_call.1} parent=23 // pred_check_branch
        %270 = sbr.rel (%p268) target = $region32
      $region31: #{tpu_custom_call.1} parent=23 // pred_region
        %s271 = smul.u32 4, %s18
      $region32: #{tpu_custom_call.1} parent=23 // pred_fallthru
        _
      // Predicated region
      $region33: #{tpu_custom_call.1} parent=23 // pred_check
        %p272 = pneg %p98
      $region34: #{tpu_custom_call.1} parent=23 // pred_check_branch
        %274 = sbr.rel (%p272) target = $region36
      $region35: #{tpu_custom_call.1} parent=23 // pred_region
        %s275 = smul.u32 4, %s18
      $region36: #{tpu_custom_call.1} parent=23 // pred_fallthru
        _
      // Predicated region
      $region37: #{tpu_custom_call.1} parent=23 // pred_check
        %p276 = pneg %p72
      $region38: #{tpu_custom_call.1} parent=23 // pred_check_branch
        %278 = sbr.rel (%p276) target = $region40
      $region39: #{tpu_custom_call.1} parent=23 // pred_region
        %s279 = smul.u32 4, %s18
        %p280 = scmp.lt.s32.totalorder %s279, 3
        %s281 = scalar_select %p280, %s279, 3
        %s282 = smul.addr %s281, 8
        %s283 = scalar_lea.vmem %s1, %s282
      $region40: #{tpu_custom_call.1} parent=23 // pred_fallthru
        _
      // Predicated region
      $region41: #{tpu_custom_call.1} parent=23 // pred_check
        %p284 = pneg %p98
      $region42: #{tpu_custom_call.1} parent=23 // pred_check_branch
        %286 = sbr.rel (%p284) target = $region44
      $region43: #{tpu_custom_call.1} parent=23 // pred_region
        %s287 = smul.u32 4, %s18
        %p288 = scmp.lt.s32.totalorder %s287, 3
        %s289 = scalar_select %p288, %s287, 3
        %s290 = smul.addr %s289, 8
        %s291 = scalar_lea.vmem %s2, %s290
      $region44: #{tpu_custom_call.1} parent=23 // pred_fallthru
        _
    $region24: #{tpu_custom_call.1} parent=5 // pred_fallthru
      _
    %p292 = scmp.le.s32.totalorder 2, %s9
    // Predicated region
    $region45: #{tpu_custom_call.1} parent=5 // pred_check
      %p293 = pneg %p292
    $region46: #{tpu_custom_call.1} parent=5 // pred_check_branch
      %295 = sbr.rel (%p293) target = $region48
    $region47: #{tpu_custom_call.1} parent=5 // pred_region
      %s296 = ssub.s32 %s9, 2
    $region48: #{tpu_custom_call.1} parent=5 // pred_fallthru
      _
  $region6: #{tpu_custom_call.1} parent=0 // loop_footer
    %s13 = sadd.s32 1, %s9
  $region7: #{tpu_custom_call.1} parent=0 // loop_footer_branch
    %8 = sbr.rel target = $region3
  $region8: #{tpu_custom_call.1} parent=0 // loop_exit
    _

</llo_original>
